<compile_context>
chip_gen: v6e
topology: v6e:2x2x1
jax: 0.10.0
libtpu: 0.0.40
codegen_flags: <defaults>
</compile_context>

<pallas_src>
import jax
import jax.numpy as jnp
from jax.experimental import pallas as pl
from jax.experimental.pallas import tpu as pltpu


def _round_up(x: int, m: int) -> int:
    return ((x + m - 1) // m) * m


def _linear_kernel(x_ref, w_ref, o_ref, acc_ref):
    # x_ref : (tb, tk) batch tile of x        (auto-pipelined HBM->VMEM DMA)
    # w_ref : (1, tk)  weight slice           (constant over the batch grid axis)
    # o_ref : (1, 1, tb) lane-dense output slab for this batch tile
    # acc_ref: (1, tb) f32 accumulator scratch (persists across the k grid axis)
    k = pl.program_id(1)

    @pl.when(k == 0)
    def _():
        acc_ref[...] = jnp.zeros_like(acc_ref)

    x = x_ref[...].astype(jnp.float32)          # (tb, tk)
    w = w_ref[...].astype(jnp.float32)          # (1, tk) broadcasts over rows (VPU)
    acc_ref[...] += jnp.sum(x * w, axis=-1).reshape(1, -1)   # XLU cross-lane reduce

    @pl.when(k == pl.num_programs(1) - 1)
    def _():
        o_ref[...] = acc_ref[...].reshape(1, 1, -1).astype(o_ref.dtype)


def linear_no_bias(
    x: jax.Array,
    w: jax.Array,
    *,
    tb: int | None = None,
    tk: int | None = None,
    force_pallas: bool = False,
) -> jax.Array:
    """x: (B, d), w: (1, d) (PyTorch nn.Linear(d, 1, bias=False) weight layout).

    Returns y of shape (B, 1) == x @ w.T.
    """
    B, d = x.shape
    assert w.shape == (1, d)
    itemsize = x.dtype.itemsize

    # Tiny inputs: a custom kernel is pure dispatch/step overhead; XLA's fused
    # matvec is strictly better on all generations.
    if not force_pallas and B * d * itemsize < (256 * 1024):
        return jnp.dot(x, w.T)

    budget = 8 * 1024 * 1024  # per pipeline buffer of x (dtype-aware)

    # ---- reduction tile over d --------------------------------------------
    if tk is None:
        if d * itemsize * 128 <= budget:
            tk = d                                      # no d-split needed
        else:
            tk = max(128, ((budget // (128 * itemsize)) // 128) * 128)
    if tk >= d:
        tk = d
        d_pad = d
        num_k = 1
    else:
        tk = max(128, _round_up(tk, 128))               # (8,128) rule on last dim
        d_pad = _round_up(d, tk)
        num_k = d_pad // tk

    # ---- batch tile: multiple of 128 for unmasked lane-dense output stores --
    if tb is None:
        tb = budget // max(1, tk * itemsize)
    tb = max(128, _round_up(tb, 128))
    tb = min(tb, _round_up(B, 128))

    num_b = -(-B // tb)
    b_pad = num_b * tb

    # Zero padding: padded rows give zero dot products (discarded), padded
    # columns contribute zero to the reduction.
    if b_pad != B or d_pad != d:
        x = jnp.pad(x, ((0, b_pad - B), (0, d_pad - d)))
    if d_pad != d:
        w = jnp.pad(w, ((0, 0), (0, d_pad - d)))

    tile_bytes = tb * tk * itemsize
    # Double-buffered x tiles + weight slices + output/acc, with headroom; keep
    # well under v7x's 64 MiB physical VMEM, above v5e's 16 MiB scoped default.
    vmem_limit_bytes = int(min(56 << 20, max(24 << 20, 2 * tile_bytes + (8 << 20))))

    out = pl.pallas_call(
        _linear_kernel,
        out_shape=jax.ShapeDtypeStruct((num_b, 1, tb), x.dtype),
        grid_spec=pltpu.PrefetchScalarGridSpec(
            num_scalar_prefetch=0,
            grid=(num_b, num_k),  # reduction axis last
            in_specs=[
                # Stream x in (tb, tk) tiles -> auto double-buffered DMA pipeline.
                pl.BlockSpec((tb, tk), lambda i, k: (i, k)),
                # Weight slice: constant over the batch axis -> VMEM-resident per k.
                pl.BlockSpec((1, tk), lambda i, k: (0, k)),
            ],
            # Lane-dense output slab per batch tile; same block across k
            # (written only on the last k step, DMA'd back when i changes).
            out_specs=pl.BlockSpec((1, 1, tb), lambda i, k: (i, 0, 0)),
            scratch_shapes=[pltpu.VMEM((1, tb), jnp.float32)],
        ),
        compiler_params=pltpu.CompilerParams(
            dimension_semantics=("parallel", "arbitrary"),
            vmem_limit_bytes=vmem_limit_bytes,
        ),
        cost_estimate=pl.CostEstimate(
            flops=2 * B * d,
            bytes_accessed=(B * d + d) * itemsize + B * itemsize,
            transcendentals=0,
        ),
    )(x, w)

    # Layout plumbing back to the PyTorch output shape (B, 1).
    return out.reshape(-1)[:B].reshape(B, 1)


if __name__ == "__main__":
    key = jax.random.PRNGKey(0)
    k_x, k_w, k_x2, k_x3, k_w3 = jax.random.split(key, 5)

    # 1) Small shape consistent with the module (batch=8, hidden d=32);
    #    force the Pallas path so the kernel itself is exercised.
    B, d = 8, 32
    x = jax.random.normal(k_x, (B, d), dtype=jnp.float32)
    w = jax.random.normal(k_w, (1, d), dtype=jnp.float32) * (1.0 / jnp.sqrt(d))
    y = linear_no_bias(x, w, force_pallas=True)
    jax.block_until_ready(y)
    assert y.shape == (B, 1)
    assert jnp.allclose(y, x @ w.T, atol=1e-5, rtol=1e-5)

    # 2) Multi-tile batch path + batch padding (B not a multiple of tb).
    B2, d2 = 200, 128
    x2 = jax.random.normal(k_x2, (B2, d2), dtype=jnp.float32)
    w2 = jax.random.normal(k_w, (1, d2), dtype=jnp.float32) * (1.0 / jnp.sqrt(d2))
    y2 = linear_no_bias(x2, w2, tb=128, force_pallas=True)
    jax.block_until_ready(y2)
    assert y2.shape == (B2, 1)
    assert jnp.allclose(y2, x2 @ w2.T, atol=1e-4, rtol=1e-4)

    # 3) d-reduction grid axis (multiple k tiles + f32 accumulator) + d padding.
    B3, d3 = 64, 320
    x3 = jax.random.normal(k_x3, (B3, d3), dtype=jnp.float32)
    w3 = jax.random.normal(k_w3, (1, d3), dtype=jnp.float32) * (1.0 / jnp.sqrt(d3))
    y3 = linear_no_bias(x3, w3, tk=128, force_pallas=True)
    jax.block_until_ready(y3)
    assert y3.shape == (B3, 1)
    assert jnp.allclose(y3, x3 @ w3.T, atol=1e-4, rtol=1e-4)

    print("KERNEL_OK")
</pallas_src>

<mosaic_0001>
module attributes {stable_mosaic.version = 11 : i64} {
  func.func @_linear_kernel(%arg0: i32, %arg1: i32, %arg2: memref<128x32xf32, #tpu.memory_space<vmem>>, %arg3: memref<1x32xf32, #tpu.memory_space<vmem>>, %arg4: memref<1x1x128xf32, #tpu.memory_space<vmem>>, %arg5: memref<1x128xf32, #tpu.memory_space<vmem>>) attributes {dimension_semantics = [#tpu.dimension_semantics<parallel>, #tpu.dimension_semantics<arbitrary>], iteration_bounds = array<i64: 1, 1>, scalar_prefetch = 0 : i64, scratch_operands = 1 : i64, tpu.core_type = #tpu.core_type<tc>, window_params = [{transform_indices = @transform_0, window_bounds = array<i64: 128, 32>}, {transform_indices = @transform_1, window_bounds = array<i64: 1, 32>}, {transform_indices = @transform_2, window_bounds = array<i64: 1, 1, 128>}]} {
    %c0_i32 = arith.constant 0 : i32
    %0 = arith.cmpi eq, %arg1, %c0_i32 : i32
    %1 = arith.extui %0 : i1 to i32
    %c0_i32_0 = arith.constant 0 : i32
    %2 = arith.cmpi ne, %1, %c0_i32_0 : i32
    scf.if %2 {
      %cst_10 = arith.constant 0.000000e+00 : f32
      %15 = vector.broadcast %cst_10 : f32 to vector<1x128xf32>
      %c0_11 = arith.constant 0 : index
      %c0_12 = arith.constant 0 : index
      %16 = vector.load %arg5[%c0_11, %c0_12] : memref<1x128xf32, #tpu.memory_space<vmem>>, vector<1x128xf32>
      tpu.vector_store %arg5[%c0_11, %c0_12], %15 {strides = array<i32>} : memref<1x128xf32, #tpu.memory_space<vmem>>, vector<1x128xf32>,
    } else {
    }
    %c0 = arith.constant 0 : index
    %c0_1 = arith.constant 0 : index
    %3 = vector.load %arg2[%c0, %c0_1] : memref<128x32xf32, #tpu.memory_space<vmem>>, vector<128x32xf32>
    %c0_2 = arith.constant 0 : index
    %c0_3 = arith.constant 0 : index
    %4 = vector.load %arg3[%c0_2, %c0_3] : memref<1x32xf32, #tpu.memory_space<vmem>>, vector<1x32xf32>
    %c0_4 = arith.constant 0 : index
    %c0_5 = arith.constant 0 : index
    %5 = vector.load %arg5[%c0_4, %c0_5] : memref<1x128xf32, #tpu.memory_space<vmem>>, vector<1x128xf32>
    %6 = vector.broadcast %4 : vector<1x32xf32> to vector<128x32xf32>
    %7 = arith.mulf %3, %6 : vector<128x32xf32>
    %cst = arith.constant dense<0.000000e+00> : vector<128xf32>
    %8 = vector.multi_reduction <add>, %7, %cst [1] : vector<128x32xf32> to vector<128xf32>
    %9 = vector.shape_cast %8 : vector<128xf32> to vector<1x128xf32>
    %10 = arith.addf %5, %9 : vector<1x128xf32>
    %c0_6 = arith.constant 0 : index
    %c0_7 = arith.constant 0 : index
    %11 = vector.load %arg5[%c0_6, %c0_7] : memref<1x128xf32, #tpu.memory_space<vmem>>, vector<1x128xf32>
    tpu.vector_store %arg5[%c0_6, %c0_7], %10 {strides = array<i32>} : memref<1x128xf32, #tpu.memory_space<vmem>>, vector<1x128xf32>,
    %c0_i32_8 = arith.constant 0 : i32
    %12 = arith.cmpi eq, %arg1, %c0_i32_8 : i32
    %13 = arith.extui %12 : i1 to i32
    %c0_i32_9 = arith.constant 0 : i32
    %14 = arith.cmpi ne, %13, %c0_i32_9 : i32
    scf.if %14 {
      %c0_10 = arith.constant 0 : index
      %c0_11 = arith.constant 0 : index
      %15 = vector.load %arg5[%c0_10, %c0_11] : memref<1x128xf32, #tpu.memory_space<vmem>>, vector<1x128xf32>
      %16 = vector.shape_cast %15 : vector<1x128xf32> to vector<1x1x128xf32>
      %c0_12 = arith.constant 0 : index
      %c0_13 = arith.constant 0 : index
      %c0_14 = arith.constant 0 : index
      %17 = vector.load %arg4[%c0_12, %c0_13, %c0_14] : memref<1x1x128xf32, #tpu.memory_space<vmem>>, vector<1x1x128xf32>
      tpu.vector_store %arg4[%c0_12, %c0_13, %c0_14], %16 {strides = array<i32>} : memref<1x1x128xf32, #tpu.memory_space<vmem>>, vector<1x1x128xf32>,
    } else {
    }
    return
  }
  func.func @transform_0(%arg0: i32, %arg1: i32) -> (i32, i32) {
    %c0_i32 = arith.constant 0 : i32
    return %arg0, %arg1 : i32, i32
  }
  func.func @transform_1(%arg0: i32, %arg1: i32) -> (i32, i32) {
    %c0_i32 = arith.constant 0 : i32
    %c0_i32_0 = arith.constant 0 : i32
    return %c0_i32, %arg1 : i32, i32
  }
  func.func @transform_2(%arg0: i32, %arg1: i32) -> (i32, i32, i32) {
    %c0_i32 = arith.constant 0 : i32
    %c0_i32_0 = arith.constant 0 : i32
    %c0_i32_1 = arith.constant 0 : i32
    return %arg0, %c0_i32, %c0_i32_0 : i32, i32, i32
  }
}

</mosaic_0001>

<llo_original>
// kernel: tpu_custom_call.1
$region0: #{tpu_custom_call.1}
  #allocation0 [shape = 'u32[]', space=smem, size = 0x4, offset = 0x4, fixed_abs, tag = 'smem constant byte address 0x4 - core index']
  #allocation1 [shape = 'u32[144,128]{1,0:T(1,128)}', space=vmem, size = 0x12000, scoped, tag = 'internal scratch']
  #allocation2 [shape = 'f32[1,128]{1,0:T(1,128)}', space=vmem, size = 0x200, scoped, tag = 'scratch operand']
  %s0 = inlined_call_operand.vmem [shape: f32[128,32], index: 0, kind: input, shape index: {}]
  %s1 = inlined_call_operand.vmem [shape: f32[1,32], index: 1, kind: input, shape index: {}]
  %s2 = inlined_call_operand.hbm [shape: f32[1,1,128], index: 2, kind: output, shape index: {}]
  %s3 = sld [smem:[#allocation0]]
  $region26: #{tpu_custom_call.1} parent=0
    _
  %s5 = ssub.s32 1, %s3
  %s6 = scalar_select 0, %s5, %s3
  $region1: #{tpu_custom_call.1} parent=0
    #allocation3 [shape = 'u8[512]{0}', space=vmem, size = 0x400, scoped, tag = 'output window, operand 0, single buffered']
    #allocation4 [shape = 's32[1]{0}', space=sflag, size = 0x4, scoped, tag = 'scoped memory for tpu_custom_call.1']
    %7 = vsyncpa [#allocation4], 0
    // Predicated region
    $region2: #{tpu_custom_call.1} parent=1 // pred_check
      _
    $region3: #{tpu_custom_call.1} parent=1 // pred_check_branch
      %9 = sbr.rel (0) target = $region5
    $region4: #{tpu_custom_call.1} parent=1 // pred_region
      _
    $region5: #{tpu_custom_call.1} parent=1 // pred_fallthru
      _
    // Predicated region
    $region6: #{tpu_custom_call.1} parent=1 // pred_check
      _
    $region7: #{tpu_custom_call.1} parent=1 // pred_check_branch
      %11 = sbr.rel (0) target = $region9
    $region8: #{tpu_custom_call.1} parent=1 // pred_region
      _
    $region9: #{tpu_custom_call.1} parent=1 // pred_fallthru
      _
    %p12 = scmp.eq.s32.totalorder 0, 0
    // Predicated region
    $region10: #{tpu_custom_call.1} parent=1 // pred_check
      %p13 = pneg %p12
    $region11: #{tpu_custom_call.1} parent=1 // pred_check_branch
      %15 = sbr.rel (%p13) target = $region13
    $region12: #{tpu_custom_call.1} parent=1 // pred_region
      %16 = vst [vmem:[#allocation2] sm:$0x1] 0.0
    $region13: #{tpu_custom_call.1} parent=1 // pred_fallthru
      _
    %v17 = vld [vmem:[%s0] sm:$0xff]
    %v18 = vld [vmem:[%s0 + $0x8] sm:$0xff]
    %v19 = vld [vmem:[%s0 + $0x10] sm:$0xff]
    %v20 = vld [vmem:[%s0 + $0x18] sm:$0xff]
    %v21 = vld [vmem:[%s0 + $0x20] sm:$0xff]
    %v22 = vld [vmem:[%s0 + $0x28] sm:$0xff]
    %v23 = vld [vmem:[%s0 + $0x30] sm:$0xff]
    %v24 = vld [vmem:[%s0 + $0x38] sm:$0xff]
    %v25 = vld [vmem:[%s0 + $0x40] sm:$0xff]
    %v26 = vld [vmem:[%s0 + $0x48] sm:$0xff]
    %v27 = vld [vmem:[%s0 + $0x50] sm:$0xff]
    %v28 = vld [vmem:[%s0 + $0x58] sm:$0xff]
    %v29 = vld [vmem:[%s0 + $0x60] sm:$0xff]
    %v30 = vld [vmem:[%s0 + $0x68] sm:$0xff]
    %v31 = vld [vmem:[%s0 + $0x70] sm:$0xff]
    %v32 = vld [vmem:[%s0 + $0x78] sm:$0xff]
    %v33 = vld [vmem:[%s1] sm:$0x1]
    %v34 = vld [vmem:[#allocation2] sm:$0x1]
    %v36 = vlaneseq
    %v37 = vshrl.u32 %v36, 7
    %v38 = vsub.s32 0, %v37
    %v39 = vrot.slane %v33, %v38
    %v41 = vmul.f32 %v17, %v39
    %v42 = vmul.f32 %v18, %v39
    %v43 = vmul.f32 %v19, %v39
    %v44 = vmul.f32 %v20, %v39
    %v45 = vmul.f32 %v21, %v39
    %v46 = vmul.f32 %v22, %v39
    %v47 = vmul.f32 %v23, %v39
    %v48 = vmul.f32 %v24, %v39
    %v49 = vmul.f32 %v25, %v39
    %v50 = vmul.f32 %v26, %v39
    %v51 = vmul.f32 %v27, %v39
    %v52 = vmul.f32 %v28, %v39
    %v53 = vmul.f32 %v29, %v39
    %v54 = vmul.f32 %v30, %v39
    %v55 = vmul.f32 %v31, %v39
    %v56 = vmul.f32 %v32, %v39
    %vm57 = vcmask 261120
    %v58 = vsel %vm57, %v41, 0.0
    %59 = vadd.xlane.f32.xlu0 %v58
    %v60 = vpop.xlane.xlu0 %59
    %v61 = vsel %vm57, %v42, 0.0
    %62 = vadd.xlane.f32.xlu0 %v61
    %v63 = vpop.xlane.xlu0 %62
    %v64 = vsel %vm57, %v43, 0.0
    %65 = vadd.xlane.f32.xlu0 %v64
    %v66 = vpop.xlane.xlu0 %65
    %v67 = vsel %vm57, %v44, 0.0
    %68 = vadd.xlane.f32.xlu0 %v67
    %v69 = vpop.xlane.xlu0 %68
    %v70 = vsel %vm57, %v45, 0.0
    %71 = vadd.xlane.f32.xlu0 %v70
    %v72 = vpop.xlane.xlu0 %71
    %v73 = vsel %vm57, %v46, 0.0
    %74 = vadd.xlane.f32.xlu0 %v73
    %v75 = vpop.xlane.xlu0 %74
    %v76 = vsel %vm57, %v47, 0.0
    %77 = vadd.xlane.f32.xlu0 %v76
    %v78 = vpop.xlane.xlu0 %77
    %v79 = vsel %vm57, %v48, 0.0
    %80 = vadd.xlane.f32.xlu0 %v79
    %v81 = vpop.xlane.xlu0 %80
    %v82 = vsel %vm57, %v49, 0.0
    %83 = vadd.xlane.f32.xlu0 %v82
    %v84 = vpop.xlane.xlu0 %83
    %v85 = vsel %vm57, %v50, 0.0
    %86 = vadd.xlane.f32.xlu0 %v85
    %v87 = vpop.xlane.xlu0 %86
    %v88 = vsel %vm57, %v51, 0.0
    %89 = vadd.xlane.f32.xlu0 %v88
    %v90 = vpop.xlane.xlu0 %89
    %v91 = vsel %vm57, %v52, 0.0
    %92 = vadd.xlane.f32.xlu0 %v91
    %v93 = vpop.xlane.xlu0 %92
    %v94 = vsel %vm57, %v53, 0.0
    %95 = vadd.xlane.f32.xlu0 %v94
    %v96 = vpop.xlane.xlu0 %95
    %v97 = vsel %vm57, %v54, 0.0
    %98 = vadd.xlane.f32.xlu0 %v97
    %v99 = vpop.xlane.xlu0 %98
    %v100 = vsel %vm57, %v55, 0.0
    %101 = vadd.xlane.f32.xlu0 %v100
    %v102 = vpop.xlane.xlu0 %101
    %v103 = vsel %vm57, %v56, 0.0
    %104 = vadd.xlane.f32.xlu0 %v103
    %v105 = vpop.xlane.xlu0 %104
    %v122 = vlaneseq
    %v123 = vshrl.u32 %v122, 7
    %v124 = vsub.s32 0, %v123
    %v125 = vrot.slane %v60, %v124
    %v126 = vlaneseq
    %v127 = vshrl.u32 %v126, 7
    %v128 = vsub.s32 1, %v127
    %v129 = vrot.slane %v60, %v128
    %v130 = vlaneseq
    %v131 = vshrl.u32 %v130, 7
    %v132 = vsub.s32 2, %v131
    %v133 = vrot.slane %v60, %v132
    %v134 = vlaneseq
    %v135 = vshrl.u32 %v134, 7
    %v136 = vsub.s32 3, %v135
    %v137 = vrot.slane %v60, %v136
    %v138 = vlaneseq
    %v139 = vshrl.u32 %v138, 7
    %v140 = vsub.s32 4, %v139
    %v141 = vrot.slane %v60, %v140
    %v142 = vlaneseq
    %v143 = vshrl.u32 %v142, 7
    %v144 = vsub.s32 5, %v143
    %v145 = vrot.slane %v60, %v144
    %v146 = vlaneseq
    %v147 = vshrl.u32 %v146, 7
    %v148 = vsub.s32 6, %v147
    %v149 = vrot.slane %v60, %v148
    %v150 = vlaneseq
    %v151 = vshrl.u32 %v150, 7
    %v152 = vsub.s32 7, %v151
    %v153 = vrot.slane %v60, %v152
    %v154 = vlaneseq
    %v155 = vshrl.u32 %v154, 7
    %v156 = vsub.s32 0, %v155
    %v157 = vrot.slane %v63, %v156
    %v158 = vlaneseq
    %v159 = vshrl.u32 %v158, 7
    %v160 = vsub.s32 1, %v159
    %v161 = vrot.slane %v63, %v160
    %v162 = vlaneseq
    %v163 = vshrl.u32 %v162, 7
    %v164 = vsub.s32 2, %v163
    %v165 = vrot.slane %v63, %v164
    %v166 = vlaneseq
    %v167 = vshrl.u32 %v166, 7
    %v168 = vsub.s32 3, %v167
    %v169 = vrot.slane %v63, %v168
    %v170 = vlaneseq
    %v171 = vshrl.u32 %v170, 7
    %v172 = vsub.s32 4, %v171
    %v173 = vrot.slane %v63, %v172
    %v174 = vlaneseq
    %v175 = vshrl.u32 %v174, 7
    %v176 = vsub.s32 5, %v175
    %v177 = vrot.slane %v63, %v176
    %v178 = vlaneseq
    %v179 = vshrl.u32 %v178, 7
    %v180 = vsub.s32 6, %v179
    %v181 = vrot.slane %v63, %v180
    %v182 = vlaneseq
    %v183 = vshrl.u32 %v182, 7
    %v184 = vsub.s32 7, %v183
    %v185 = vrot.slane %v63, %v184
    %v186 = vlaneseq
    %v187 = vshrl.u32 %v186, 7
    %v188 = vsub.s32 0, %v187
    %v189 = vrot.slane %v66, %v188
    %v190 = vlaneseq
    %v191 = vshrl.u32 %v190, 7
    %v192 = vsub.s32 1, %v191
    %v193 = vrot.slane %v66, %v192
    %v194 = vlaneseq
    %v195 = vshrl.u32 %v194, 7
    %v196 = vsub.s32 2, %v195
    %v197 = vrot.slane %v66, %v196
    %v198 = vlaneseq
    %v199 = vshrl.u32 %v198, 7
    %v200 = vsub.s32 3, %v199
    %v201 = vrot.slane %v66, %v200
    %v202 = vlaneseq
    %v203 = vshrl.u32 %v202, 7
    %v204 = vsub.s32 4, %v203
    %v205 = vrot.slane %v66, %v204
    %v206 = vlaneseq
    %v207 = vshrl.u32 %v206, 7
    %v208 = vsub.s32 5, %v207
    %v209 = vrot.slane %v66, %v208
    %v210 = vlaneseq
    %v211 = vshrl.u32 %v210, 7
    %v212 = vsub.s32 6, %v211
    %v213 = vrot.slane %v66, %v212
    %v214 = vlaneseq
    %v215 = vshrl.u32 %v214, 7
    %v216 = vsub.s32 7, %v215
    %v217 = vrot.slane %v66, %v216
    %v218 = vlaneseq
    %v219 = vshrl.u32 %v218, 7
    %v220 = vsub.s32 0, %v219
    %v221 = vrot.slane %v69, %v220
    %v222 = vlaneseq
    %v223 = vshrl.u32 %v222, 7
    %v224 = vsub.s32 1, %v223
    %v225 = vrot.slane %v69, %v224
    %v226 = vlaneseq
    %v227 = vshrl.u32 %v226, 7
    %v228 = vsub.s32 2, %v227
    %v229 = vrot.slane %v69, %v228
    %v230 = vlaneseq
    %v231 = vshrl.u32 %v230, 7
    %v232 = vsub.s32 3, %v231
    %v233 = vrot.slane %v69, %v232
    %v234 = vlaneseq
    %v235 = vshrl.u32 %v234, 7
    %v236 = vsub.s32 4, %v235
    %v237 = vrot.slane %v69, %v236
    %v238 = vlaneseq
    %v239 = vshrl.u32 %v238, 7
    %v240 = vsub.s32 5, %v239
    %v241 = vrot.slane %v69, %v240
    %v242 = vlaneseq
    %v243 = vshrl.u32 %v242, 7
    %v244 = vsub.s32 6, %v243
    %v245 = vrot.slane %v69, %v244
    %v246 = vlaneseq
    %v247 = vshrl.u32 %v246, 7
    %v248 = vsub.s32 7, %v247
    %v249 = vrot.slane %v69, %v248
    %v250 = vlaneseq
    %v251 = vshrl.u32 %v250, 7
    %v252 = vsub.s32 0, %v251
    %v253 = vrot.slane %v72, %v252
    %v254 = vlaneseq
    %v255 = vshrl.u32 %v254, 7
    %v256 = vsub.s32 1, %v255
    %v257 = vrot.slane %v72, %v256
    %v258 = vlaneseq
    %v259 = vshrl.u32 %v258, 7
    %v260 = vsub.s32 2, %v259
    %v261 = vrot.slane %v72, %v260
    %v262 = vlaneseq
    %v263 = vshrl.u32 %v262, 7
    %v264 = vsub.s32 3, %v263
    %v265 = vrot.slane %v72, %v264
    %v266 = vlaneseq
    %v267 = vshrl.u32 %v266, 7
    %v268 = vsub.s32 4, %v267
    %v269 = vrot.slane %v72, %v268
    %v270 = vlaneseq
    %v271 = vshrl.u32 %v270, 7
    %v272 = vsub.s32 5, %v271
    %v273 = vrot.slane %v72, %v272
    %v274 = vlaneseq
    %v275 = vshrl.u32 %v274, 7
    %v276 = vsub.s32 6, %v275
    %v277 = vrot.slane %v72, %v276
    %v278 = vlaneseq
    %v279 = vshrl.u32 %v278, 7
    %v280 = vsub.s32 7, %v279
    %v281 = vrot.slane %v72, %v280
    %v282 = vlaneseq
    %v283 = vshrl.u32 %v282, 7
    %v284 = vsub.s32 0, %v283
    %v285 = vrot.slane %v75, %v284
    %v286 = vlaneseq
    %v287 = vshrl.u32 %v286, 7
    %v288 = vsub.s32 1, %v287
    %v289 = vrot.slane %v75, %v288
    %v290 = vlaneseq
    %v291 = vshrl.u32 %v290, 7
    %v292 = vsub.s32 2, %v291
    %v293 = vrot.slane %v75, %v292
    %v294 = vlaneseq
    %v295 = vshrl.u32 %v294, 7
    %v296 = vsub.s32 3, %v295
    %v297 = vrot.slane %v75, %v296
    %v298 = vlaneseq
    %v299 = vshrl.u32 %v298, 7
    %v300 = vsub.s32 4, %v299
    %v301 = vrot.slane %v75, %v300
    %v302 = vlaneseq
    %v303 = vshrl.u32 %v302, 7
    %v304 = vsub.s32 5, %v303
    %v305 = vrot.slane %v75, %v304
    %v306 = vlaneseq
    %v307 = vshrl.u32 %v306, 7
    %v308 = vsub.s32 6, %v307
    %v309 = vrot.slane %v75, %v308
    %v310 = vlaneseq
    %v311 = vshrl.u32 %v310, 7
    %v312 = vsub.s32 7, %v311
    %v313 = vrot.slane %v75, %v312
    %v314 = vlaneseq
    %v315 = vshrl.u32 %v314, 7
    %v316 = vsub.s32 0, %v315
    %v317 = vrot.slane %v78, %v316
    %v318 = vlaneseq
    %v319 = vshrl.u32 %v318, 7
    %v320 = vsub.s32 1, %v319
    %v321 = vrot.slane %v78, %v320
    %v322 = vlaneseq
    %v323 = vshrl.u32 %v322, 7
    %v324 = vsub.s32 2, %v323
    %v325 = vrot.slane %v78, %v324
    %v326 = vlaneseq
    %v327 = vshrl.u32 %v326, 7
    %v328 = vsub.s32 3, %v327
    %v329 = vrot.slane %v78, %v328
    %v330 = vlaneseq
    %v331 = vshrl.u32 %v330, 7
    %v332 = vsub.s32 4, %v331
    %v333 = vrot.slane %v78, %v332
    %v334 = vlaneseq
    %v335 = vshrl.u32 %v334, 7
    %v336 = vsub.s32 5, %v335
    %v337 = vrot.slane %v78, %v336
    %v338 = vlaneseq
    %v339 = vshrl.u32 %v338, 7
    %v340 = vsub.s32 6, %v339
    %v341 = vrot.slane %v78, %v340
    %v342 = vlaneseq
    %v343 = vshrl.u32 %v342, 7
    %v344 = vsub.s32 7, %v343
    %v345 = vrot.slane %v78, %v344
    %v346 = vlaneseq
    %v347 = vshrl.u32 %v346, 7
    %v348 = vsub.s32 0, %v347
    %v349 = vrot.slane %v81, %v348
    %v350 = vlaneseq
    %v351 = vshrl.u32 %v350, 7
    %v352 = vsub.s32 1, %v351
    %v353 = vrot.slane %v81, %v352
    %v354 = vlaneseq
    %v355 = vshrl.u32 %v354, 7
    %v356 = vsub.s32 2, %v355
    %v357 = vrot.slane %v81, %v356
    %v358 = vlaneseq
    %v359 = vshrl.u32 %v358, 7
    %v360 = vsub.s32 3, %v359
    %v361 = vrot.slane %v81, %v360
    %v362 = vlaneseq
    %v363 = vshrl.u32 %v362, 7
    %v364 = vsub.s32 4, %v363
    %v365 = vrot.slane %v81, %v364
    %v366 = vlaneseq
    %v367 = vshrl.u32 %v366, 7
    %v368 = vsub.s32 5, %v367
    %v369 = vrot.slane %v81, %v368
    %v370 = vlaneseq
    %v371 = vshrl.u32 %v370, 7
    %v372 = vsub.s32 6, %v371
    %v373 = vrot.slane %v81, %v372
    %v374 = vlaneseq
    %v375 = vshrl.u32 %v374, 7
    %v376 = vsub.s32 7, %v375
    %v377 = vrot.slane %v81, %v376
    %v378 = vlaneseq
    %v379 = vshrl.u32 %v378, 7
    %v380 = vsub.s32 0, %v379
    %v381 = vrot.slane %v84, %v380
    %v382 = vlaneseq
    %v383 = vshrl.u32 %v382, 7
    %v384 = vsub.s32 1, %v383
    %v385 = vrot.slane %v84, %v384
    %v386 = vlaneseq
    %v387 = vshrl.u32 %v386, 7
    %v388 = vsub.s32 2, %v387
    %v389 = vrot.slane %v84, %v388
    %v390 = vlaneseq
    %v391 = vshrl.u32 %v390, 7
    %v392 = vsub.s32 3, %v391
    %v393 = vrot.slane %v84, %v392
    %v394 = vlaneseq
    %v395 = vshrl.u32 %v394, 7
    %v396 = vsub.s32 4, %v395
    %v397 = vrot.slane %v84, %v396
    %v398 = vlaneseq
    %v399 = vshrl.u32 %v398, 7
    %v400 = vsub.s32 5, %v399
    %v401 = vrot.slane %v84, %v400
    %v402 = vlaneseq
    %v403 = vshrl.u32 %v402, 7
    %v404 = vsub.s32 6, %v403
    %v405 = vrot.slane %v84, %v404
    %v406 = vlaneseq
    %v407 = vshrl.u32 %v406, 7
    %v408 = vsub.s32 7, %v407
    %v409 = vrot.slane %v84, %v408
    %v410 = vlaneseq
    %v411 = vshrl.u32 %v410, 7
    %v412 = vsub.s32 0, %v411
    %v413 = vrot.slane %v87, %v412
    %v414 = vlaneseq
    %v415 = vshrl.u32 %v414, 7
    %v416 = vsub.s32 1, %v415
    %v417 = vrot.slane %v87, %v416
    %v418 = vlaneseq
    %v419 = vshrl.u32 %v418, 7
    %v420 = vsub.s32 2, %v419
    %v421 = vrot.slane %v87, %v420
    %v422 = vlaneseq
    %v423 = vshrl.u32 %v422, 7
    %v424 = vsub.s32 3, %v423
    %v425 = vrot.slane %v87, %v424
    %v426 = vlaneseq
    %v427 = vshrl.u32 %v426, 7
    %v428 = vsub.s32 4, %v427
    %v429 = vrot.slane %v87, %v428
    %v430 = vlaneseq
    %v431 = vshrl.u32 %v430, 7
    %v432 = vsub.s32 5, %v431
    %v433 = vrot.slane %v87, %v432
    %v434 = vlaneseq
    %v435 = vshrl.u32 %v434, 7
    %v436 = vsub.s32 6, %v435
    %v437 = vrot.slane %v87, %v436
    %v438 = vlaneseq
    %v439 = vshrl.u32 %v438, 7
    %v440 = vsub.s32 7, %v439
    %v441 = vrot.slane %v87, %v440
    %v442 = vlaneseq
    %v443 = vshrl.u32 %v442, 7
    %v444 = vsub.s32 0, %v443
    %v445 = vrot.slane %v90, %v444
    %v446 = vlaneseq
    %v447 = vshrl.u32 %v446, 7
    %v448 = vsub.s32 1, %v447
    %v449 = vrot.slane %v90, %v448
    %v450 = vlaneseq
    %v451 = vshrl.u32 %v450, 7
    %v452 = vsub.s32 2, %v451
    %v453 = vrot.slane %v90, %v452
    %v454 = vlaneseq
    %v455 = vshrl.u32 %v454, 7
    %v456 = vsub.s32 3, %v455
    %v457 = vrot.slane %v90, %v456
    %v458 = vlaneseq
    %v459 = vshrl.u32 %v458, 7
    %v460 = vsub.s32 4, %v459
    %v461 = vrot.slane %v90, %v460
    %v462 = vlaneseq
    %v463 = vshrl.u32 %v462, 7
    %v464 = vsub.s32 5, %v463
    %v465 = vrot.slane %v90, %v464
    %v466 = vlaneseq
    %v467 = vshrl.u32 %v466, 7
    %v468 = vsub.s32 6, %v467
    %v469 = vrot.slane %v90, %v468
    %v470 = vlaneseq
    %v471 = vshrl.u32 %v470, 7
    %v472 = vsub.s32 7, %v471
    %v473 = vrot.slane %v90, %v472
    %v474 = vlaneseq
    %v475 = vshrl.u32 %v474, 7
    %v476 = vsub.s32 0, %v475
    %v477 = vrot.slane %v93, %v476
    %v478 = vlaneseq
    %v479 = vshrl.u32 %v478, 7
    %v480 = vsub.s32 1, %v479
    %v481 = vrot.slane %v93, %v480
    %v482 = vlaneseq
    %v483 = vshrl.u32 %v482, 7
    %v484 = vsub.s32 2, %v483
    %v485 = vrot.slane %v93, %v484
    %v486 = vlaneseq
    %v487 = vshrl.u32 %v486, 7
    %v488 = vsub.s32 3, %v487
    %v489 = vrot.slane %v93, %v488
    %v490 = vlaneseq
    %v491 = vshrl.u32 %v490, 7
    %v492 = vsub.s32 4, %v491
    %v493 = vrot.slane %v93, %v492
    %v494 = vlaneseq
    %v495 = vshrl.u32 %v494, 7
    %v496 = vsub.s32 5, %v495
    %v497 = vrot.slane %v93, %v496
    %v498 = vlaneseq
    %v499 = vshrl.u32 %v498, 7
    %v500 = vsub.s32 6, %v499
    %v501 = vrot.slane %v93, %v500
    %v502 = vlaneseq
    %v503 = vshrl.u32 %v502, 7
    %v504 = vsub.s32 7, %v503
    %v505 = vrot.slane %v93, %v504
    %v506 = vlaneseq
    %v507 = vshrl.u32 %v506, 7
    %v508 = vsub.s32 0, %v507
    %v509 = vrot.slane %v96, %v508
    %v510 = vlaneseq
    %v511 = vshrl.u32 %v510, 7
    %v512 = vsub.s32 1, %v511
    %v513 = vrot.slane %v96, %v512
    %v514 = vlaneseq
    %v515 = vshrl.u32 %v514, 7
    %v516 = vsub.s32 2, %v515
    %v517 = vrot.slane %v96, %v516
    %v518 = vlaneseq
    %v519 = vshrl.u32 %v518, 7
    %v520 = vsub.s32 3, %v519
    %v521 = vrot.slane %v96, %v520
    %v522 = vlaneseq
    %v523 = vshrl.u32 %v522, 7
    %v524 = vsub.s32 4, %v523
    %v525 = vrot.slane %v96, %v524
    %v526 = vlaneseq
    %v527 = vshrl.u32 %v526, 7
    %v528 = vsub.s32 5, %v527
    %v529 = vrot.slane %v96, %v528
    %v530 = vlaneseq
    %v531 = vshrl.u32 %v530, 7
    %v532 = vsub.s32 6, %v531
    %v533 = vrot.slane %v96, %v532
    %v534 = vlaneseq
    %v535 = vshrl.u32 %v534, 7
    %v536 = vsub.s32 7, %v535
    %v537 = vrot.slane %v96, %v536
    %v538 = vlaneseq
    %v539 = vshrl.u32 %v538, 7
    %v540 = vsub.s32 0, %v539
    %v541 = vrot.slane %v99, %v540
    %v542 = vlaneseq
    %v543 = vshrl.u32 %v542, 7
    %v544 = vsub.s32 1, %v543
    %v545 = vrot.slane %v99, %v544
    %v546 = vlaneseq
    %v547 = vshrl.u32 %v546, 7
    %v548 = vsub.s32 2, %v547
    %v549 = vrot.slane %v99, %v548
    %v550 = vlaneseq
    %v551 = vshrl.u32 %v550, 7
    %v552 = vsub.s32 3, %v551
    %v553 = vrot.slane %v99, %v552
    %v554 = vlaneseq
    %v555 = vshrl.u32 %v554, 7
    %v556 = vsub.s32 4, %v555
    %v557 = vrot.slane %v99, %v556
    %v558 = vlaneseq
    %v559 = vshrl.u32 %v558, 7
    %v560 = vsub.s32 5, %v559
    %v561 = vrot.slane %v99, %v560
    %v562 = vlaneseq
    %v563 = vshrl.u32 %v562, 7
    %v564 = vsub.s32 6, %v563
    %v565 = vrot.slane %v99, %v564
    %v566 = vlaneseq
    %v567 = vshrl.u32 %v566, 7
    %v568 = vsub.s32 7, %v567
    %v569 = vrot.slane %v99, %v568
    %v570 = vlaneseq
    %v571 = vshrl.u32 %v570, 7
    %v572 = vsub.s32 0, %v571
    %v573 = vrot.slane %v102, %v572
    %v574 = vlaneseq
    %v575 = vshrl.u32 %v574, 7
    %v576 = vsub.s32 1, %v575
    %v577 = vrot.slane %v102, %v576
    %v578 = vlaneseq
    %v579 = vshrl.u32 %v578, 7
    %v580 = vsub.s32 2, %v579
    %v581 = vrot.slane %v102, %v580
    %v582 = vlaneseq
    %v583 = vshrl.u32 %v582, 7
    %v584 = vsub.s32 3, %v583
    %v585 = vrot.slane %v102, %v584
    %v586 = vlaneseq
    %v587 = vshrl.u32 %v586, 7
    %v588 = vsub.s32 4, %v587
    %v589 = vrot.slane %v102, %v588
    %v590 = vlaneseq
    %v591 = vshrl.u32 %v590, 7
    %v592 = vsub.s32 5, %v591
    %v593 = vrot.slane %v102, %v592
    %v594 = vlaneseq
    %v595 = vshrl.u32 %v594, 7
    %v596 = vsub.s32 6, %v595
    %v597 = vrot.slane %v102, %v596
    %v598 = vlaneseq
    %v599 = vshrl.u32 %v598, 7
    %v600 = vsub.s32 7, %v599
    %v601 = vrot.slane %v102, %v600
    %v602 = vlaneseq
    %v603 = vshrl.u32 %v602, 7
    %v604 = vsub.s32 0, %v603
    %v605 = vrot.slane %v105, %v604
    %v606 = vlaneseq
    %v607 = vshrl.u32 %v606, 7
    %v608 = vsub.s32 1, %v607
    %v609 = vrot.slane %v105, %v608
    %v610 = vlaneseq
    %v611 = vshrl.u32 %v610, 7
    %v612 = vsub.s32 2, %v611
    %v613 = vrot.slane %v105, %v612
    %v614 = vlaneseq
    %v615 = vshrl.u32 %v614, 7
    %v616 = vsub.s32 3, %v615
    %v617 = vrot.slane %v105, %v616
    %v618 = vlaneseq
    %v619 = vshrl.u32 %v618, 7
    %v620 = vsub.s32 4, %v619
    %v621 = vrot.slane %v105, %v620
    %v622 = vlaneseq
    %v623 = vshrl.u32 %v622, 7
    %v624 = vsub.s32 5, %v623
    %v625 = vrot.slane %v105, %v624
    %v626 = vlaneseq
    %v627 = vshrl.u32 %v626, 7
    %v628 = vsub.s32 6, %v627
    %v629 = vrot.slane %v105, %v628
    %v630 = vlaneseq
    %v631 = vshrl.u32 %v630, 7
    %v632 = vsub.s32 7, %v631
    %v633 = vrot.slane %v105, %v632
    %v634 = vcombine.low %v125, %v129
    %v635 = vcombine.low %v133, %v137
    %v636 = vcombine.low %v141, %v145
    %v637 = vcombine.low %v149, %v153
    %v639 = vunpack.c.l.s4 1966171168
    %v640 = vunpack.c.0.s8 %v639
    %v641 = vlaneseq
    %v642 = vshrl.u32 %v641, 7
    %v643 = vsub.s32 %v640, %v642
    %v644 = vrot.slane %v634, %v643
    %v646 = vunpack.c.l.s4 1966171168
    %v647 = vunpack.c.0.s8 %v646
    %v648 = vlaneseq
    %v649 = vshrl.u32 %v648, 7
    %v650 = vsub.s32 %v647, %v649
    %v651 = vrot.slane %v635, %v650
    %v653 = vunpack.c.l.s4 1966171168
    %v654 = vunpack.c.0.s8 %v653
    %v655 = vlaneseq
    %v656 = vshrl.u32 %v655, 7
    %v657 = vsub.s32 %v654, %v656
    %v658 = vrot.slane %v636, %v657
    %v660 = vunpack.c.l.s4 1966171168
    %v661 = vunpack.c.0.s8 %v660
    %v662 = vlaneseq
    %v663 = vshrl.u32 %v662, 7
    %v664 = vsub.s32 %v661, %v663
    %v665 = vrot.slane %v637, %v664
    %v666 = vcombine.low %v644, %v651
    %v667 = vcombine.low %v658, %v665
    %v669 = vunpack.c.l.s4 1966171168
    %v670 = vunpack.c.0.s8 %v669
    %v671 = vlaneseq
    %v672 = vshrl.u32 %v671, 7
    %v673 = vsub.s32 %v670, %v672
    %v674 = vrot.slane %v666, %v673
    %v676 = vunpack.c.l.s4 1966171168
    %v677 = vunpack.c.0.s8 %v676
    %v678 = vlaneseq
    %v679 = vshrl.u32 %v678, 7
    %v680 = vsub.s32 %v677, %v679
    %v681 = vrot.slane %v667, %v680
    %v682 = vcombine.low %v674, %v681
    %v683 = vcombine.low %v157, %v161
    %v684 = vcombine.low %v165, %v169
    %v685 = vcombine.low %v173, %v177
    %v686 = vcombine.low %v181, %v185
    %v688 = vunpack.c.l.s4 1966171168
    %v689 = vunpack.c.0.s8 %v688
    %v690 = vlaneseq
    %v691 = vshrl.u32 %v690, 7
    %v692 = vsub.s32 %v689, %v691
    %v693 = vrot.slane %v683, %v692
    %v695 = vunpack.c.l.s4 1966171168
    %v696 = vunpack.c.0.s8 %v695
    %v697 = vlaneseq
    %v698 = vshrl.u32 %v697, 7
    %v699 = vsub.s32 %v696, %v698
    %v700 = vrot.slane %v684, %v699
    %v702 = vunpack.c.l.s4 1966171168
    %v703 = vunpack.c.0.s8 %v702
    %v704 = vlaneseq
    %v705 = vshrl.u32 %v704, 7
    %v706 = vsub.s32 %v703, %v705
    %v707 = vrot.slane %v685, %v706
    %v709 = vunpack.c.l.s4 1966171168
    %v710 = vunpack.c.0.s8 %v709
    %v711 = vlaneseq
    %v712 = vshrl.u32 %v711, 7
    %v713 = vsub.s32 %v710, %v712
    %v714 = vrot.slane %v686, %v713
    %v715 = vcombine.low %v693, %v700
    %v716 = vcombine.low %v707, %v714
    %v718 = vunpack.c.l.s4 1966171168
    %v719 = vunpack.c.0.s8 %v718
    %v720 = vlaneseq
    %v721 = vshrl.u32 %v720, 7
    %v722 = vsub.s32 %v719, %v721
    %v723 = vrot.slane %v715, %v722
    %v725 = vunpack.c.l.s4 1966171168
    %v726 = vunpack.c.0.s8 %v725
    %v727 = vlaneseq
    %v728 = vshrl.u32 %v727, 7
    %v729 = vsub.s32 %v726, %v728
    %v730 = vrot.slane %v716, %v729
    %v731 = vcombine.low %v723, %v730
    %v732 = vcombine.low %v189, %v193
    %v733 = vcombine.low %v197, %v201
    %v734 = vcombine.low %v205, %v209
    %v735 = vcombine.low %v213, %v217
    %v737 = vunpack.c.l.s4 1966171168
    %v738 = vunpack.c.0.s8 %v737
    %v739 = vlaneseq
    %v740 = vshrl.u32 %v739, 7
    %v741 = vsub.s32 %v738, %v740
    %v742 = vrot.slane %v732, %v741
    %v744 = vunpack.c.l.s4 1966171168
    %v745 = vunpack.c.0.s8 %v744
    %v746 = vlaneseq
    %v747 = vshrl.u32 %v746, 7
    %v748 = vsub.s32 %v745, %v747
    %v749 = vrot.slane %v733, %v748
    %v751 = vunpack.c.l.s4 1966171168
    %v752 = vunpack.c.0.s8 %v751
    %v753 = vlaneseq
    %v754 = vshrl.u32 %v753, 7
    %v755 = vsub.s32 %v752, %v754
    %v756 = vrot.slane %v734, %v755
    %v758 = vunpack.c.l.s4 1966171168
    %v759 = vunpack.c.0.s8 %v758
    %v760 = vlaneseq
    %v761 = vshrl.u32 %v760, 7
    %v762 = vsub.s32 %v759, %v761
    %v763 = vrot.slane %v735, %v762
    %v764 = vcombine.low %v742, %v749
    %v765 = vcombine.low %v756, %v763
    %v767 = vunpack.c.l.s4 1966171168
    %v768 = vunpack.c.0.s8 %v767
    %v769 = vlaneseq
    %v770 = vshrl.u32 %v769, 7
    %v771 = vsub.s32 %v768, %v770
    %v772 = vrot.slane %v764, %v771
    %v774 = vunpack.c.l.s4 1966171168
    %v775 = vunpack.c.0.s8 %v774
    %v776 = vlaneseq
    %v777 = vshrl.u32 %v776, 7
    %v778 = vsub.s32 %v775, %v777
    %v779 = vrot.slane %v765, %v778
    %v780 = vcombine.low %v772, %v779
    %v781 = vcombine.low %v221, %v225
    %v782 = vcombine.low %v229, %v233
    %v783 = vcombine.low %v237, %v241
    %v784 = vcombine.low %v245, %v249
    %v786 = vunpack.c.l.s4 1966171168
    %v787 = vunpack.c.0.s8 %v786
    %v788 = vlaneseq
    %v789 = vshrl.u32 %v788, 7
    %v790 = vsub.s32 %v787, %v789
    %v791 = vrot.slane %v781, %v790
    %v793 = vunpack.c.l.s4 1966171168
    %v794 = vunpack.c.0.s8 %v793
    %v795 = vlaneseq
    %v796 = vshrl.u32 %v795, 7
    %v797 = vsub.s32 %v794, %v796
    %v798 = vrot.slane %v782, %v797
    %v800 = vunpack.c.l.s4 1966171168
    %v801 = vunpack.c.0.s8 %v800
    %v802 = vlaneseq
    %v803 = vshrl.u32 %v802, 7
    %v804 = vsub.s32 %v801, %v803
    %v805 = vrot.slane %v783, %v804
    %v807 = vunpack.c.l.s4 1966171168
    %v808 = vunpack.c.0.s8 %v807
    %v809 = vlaneseq
    %v810 = vshrl.u32 %v809, 7
    %v811 = vsub.s32 %v808, %v810
    %v812 = vrot.slane %v784, %v811
    %v813 = vcombine.low %v791, %v798
    %v814 = vcombine.low %v805, %v812
    %v816 = vunpack.c.l.s4 1966171168
    %v817 = vunpack.c.0.s8 %v816
    %v818 = vlaneseq
    %v819 = vshrl.u32 %v818, 7
    %v820 = vsub.s32 %v817, %v819
    %v821 = vrot.slane %v813, %v820
    %v823 = vunpack.c.l.s4 1966171168
    %v824 = vunpack.c.0.s8 %v823
    %v825 = vlaneseq
    %v826 = vshrl.u32 %v825, 7
    %v827 = vsub.s32 %v824, %v826
    %v828 = vrot.slane %v814, %v827
    %v829 = vcombine.low %v821, %v828
    %v830 = vcombine.low %v253, %v257
    %v831 = vcombine.low %v261, %v265
    %v832 = vcombine.low %v269, %v273
    %v833 = vcombine.low %v277, %v281
    %v835 = vunpack.c.l.s4 1966171168
    %v836 = vunpack.c.0.s8 %v835
    %v837 = vlaneseq
    %v838 = vshrl.u32 %v837, 7
    %v839 = vsub.s32 %v836, %v838
    %v840 = vrot.slane %v830, %v839
    %v842 = vunpack.c.l.s4 1966171168
    %v843 = vunpack.c.0.s8 %v842
    %v844 = vlaneseq
    %v845 = vshrl.u32 %v844, 7
    %v846 = vsub.s32 %v843, %v845
    %v847 = vrot.slane %v831, %v846
    %v849 = vunpack.c.l.s4 1966171168
    %v850 = vunpack.c.0.s8 %v849
    %v851 = vlaneseq
    %v852 = vshrl.u32 %v851, 7
    %v853 = vsub.s32 %v850, %v852
    %v854 = vrot.slane %v832, %v853
    %v856 = vunpack.c.l.s4 1966171168
    %v857 = vunpack.c.0.s8 %v856
    %v858 = vlaneseq
    %v859 = vshrl.u32 %v858, 7
    %v860 = vsub.s32 %v857, %v859
    %v861 = vrot.slane %v833, %v860
    %v862 = vcombine.low %v840, %v847
    %v863 = vcombine.low %v854, %v861
    %v865 = vunpack.c.l.s4 1966171168
    %v866 = vunpack.c.0.s8 %v865
    %v867 = vlaneseq
    %v868 = vshrl.u32 %v867, 7
    %v869 = vsub.s32 %v866, %v868
    %v870 = vrot.slane %v862, %v869
    %v872 = vunpack.c.l.s4 1966171168
    %v873 = vunpack.c.0.s8 %v872
    %v874 = vlaneseq
    %v875 = vshrl.u32 %v874, 7
    %v876 = vsub.s32 %v873, %v875
    %v877 = vrot.slane %v863, %v876
    %v878 = vcombine.low %v870, %v877
    %v879 = vcombine.low %v285, %v289
    %v880 = vcombine.low %v293, %v297
    %v881 = vcombine.low %v301, %v305
    %v882 = vcombine.low %v309, %v313
    %v884 = vunpack.c.l.s4 1966171168
    %v885 = vunpack.c.0.s8 %v884
    %v886 = vlaneseq
    %v887 = vshrl.u32 %v886, 7
    %v888 = vsub.s32 %v885, %v887
    %v889 = vrot.slane %v879, %v888
    %v891 = vunpack.c.l.s4 1966171168
    %v892 = vunpack.c.0.s8 %v891
    %v893 = vlaneseq
    %v894 = vshrl.u32 %v893, 7
    %v895 = vsub.s32 %v892, %v894
    %v896 = vrot.slane %v880, %v895
    %v898 = vunpack.c.l.s4 1966171168
    %v899 = vunpack.c.0.s8 %v898
    %v900 = vlaneseq
    %v901 = vshrl.u32 %v900, 7
    %v902 = vsub.s32 %v899, %v901
    %v903 = vrot.slane %v881, %v902
    %v905 = vunpack.c.l.s4 1966171168
    %v906 = vunpack.c.0.s8 %v905
    %v907 = vlaneseq
    %v908 = vshrl.u32 %v907, 7
    %v909 = vsub.s32 %v906, %v908
    %v910 = vrot.slane %v882, %v909
    %v911 = vcombine.low %v889, %v896
    %v912 = vcombine.low %v903, %v910
    %v914 = vunpack.c.l.s4 1966171168
    %v915 = vunpack.c.0.s8 %v914
    %v916 = vlaneseq
    %v917 = vshrl.u32 %v916, 7
    %v918 = vsub.s32 %v915, %v917
    %v919 = vrot.slane %v911, %v918
    %v921 = vunpack.c.l.s4 1966171168
    %v922 = vunpack.c.0.s8 %v921
    %v923 = vlaneseq
    %v924 = vshrl.u32 %v923, 7
    %v925 = vsub.s32 %v922, %v924
    %v926 = vrot.slane %v912, %v925
    %v927 = vcombine.low %v919, %v926
    %v928 = vcombine.low %v317, %v321
    %v929 = vcombine.low %v325, %v329
    %v930 = vcombine.low %v333, %v337
    %v931 = vcombine.low %v341, %v345
    %v933 = vunpack.c.l.s4 1966171168
    %v934 = vunpack.c.0.s8 %v933
    %v935 = vlaneseq
    %v936 = vshrl.u32 %v935, 7
    %v937 = vsub.s32 %v934, %v936
    %v938 = vrot.slane %v928, %v937
    %v940 = vunpack.c.l.s4 1966171168
    %v941 = vunpack.c.0.s8 %v940
    %v942 = vlaneseq
    %v943 = vshrl.u32 %v942, 7
    %v944 = vsub.s32 %v941, %v943
    %v945 = vrot.slane %v929, %v944
    %v947 = vunpack.c.l.s4 1966171168
    %v948 = vunpack.c.0.s8 %v947
    %v949 = vlaneseq
    %v950 = vshrl.u32 %v949, 7
    %v951 = vsub.s32 %v948, %v950
    %v952 = vrot.slane %v930, %v951
    %v954 = vunpack.c.l.s4 1966171168
    %v955 = vunpack.c.0.s8 %v954
    %v956 = vlaneseq
    %v957 = vshrl.u32 %v956, 7
    %v958 = vsub.s32 %v955, %v957
    %v959 = vrot.slane %v931, %v958
    %v960 = vcombine.low %v938, %v945
    %v961 = vcombine.low %v952, %v959
    %v963 = vunpack.c.l.s4 1966171168
    %v964 = vunpack.c.0.s8 %v963
    %v965 = vlaneseq
    %v966 = vshrl.u32 %v965, 7
    %v967 = vsub.s32 %v964, %v966
    %v968 = vrot.slane %v960, %v967
    %v970 = vunpack.c.l.s4 1966171168
    %v971 = vunpack.c.0.s8 %v970
    %v972 = vlaneseq
    %v973 = vshrl.u32 %v972, 7
    %v974 = vsub.s32 %v971, %v973
    %v975 = vrot.slane %v961, %v974
    %v976 = vcombine.low %v968, %v975
    %v977 = vcombine.low %v349, %v353
    %v978 = vcombine.low %v357, %v361
    %v979 = vcombine.low %v365, %v369
    %v980 = vcombine.low %v373, %v377
    %v982 = vunpack.c.l.s4 1966171168
    %v983 = vunpack.c.0.s8 %v982
    %v984 = vlaneseq
    %v985 = vshrl.u32 %v984, 7
    %v986 = vsub.s32 %v983, %v985
    %v987 = vrot.slane %v977, %v986
    %v989 = vunpack.c.l.s4 1966171168
    %v990 = vunpack.c.0.s8 %v989
    %v991 = vlaneseq
    %v992 = vshrl.u32 %v991, 7
    %v993 = vsub.s32 %v990, %v992
    %v994 = vrot.slane %v978, %v993
    %v996 = vunpack.c.l.s4 1966171168
    %v997 = vunpack.c.0.s8 %v996
    %v998 = vlaneseq
    %v999 = vshrl.u32 %v998, 7
    %v1000 = vsub.s32 %v997, %v999
    %v1001 = vrot.slane %v979, %v1000
    %v1003 = vunpack.c.l.s4 1966171168
    %v1004 = vunpack.c.0.s8 %v1003
    %v1005 = vlaneseq
    %v1006 = vshrl.u32 %v1005, 7
    %v1007 = vsub.s32 %v1004, %v1006
    %v1008 = vrot.slane %v980, %v1007
    %v1009 = vcombine.low %v987, %v994
    %v1010 = vcombine.low %v1001, %v1008
    %v1012 = vunpack.c.l.s4 1966171168
    %v1013 = vunpack.c.0.s8 %v1012
    %v1014 = vlaneseq
    %v1015 = vshrl.u32 %v1014, 7
    %v1016 = vsub.s32 %v1013, %v1015
    %v1017 = vrot.slane %v1009, %v1016
    %v1019 = vunpack.c.l.s4 1966171168
    %v1020 = vunpack.c.0.s8 %v1019
    %v1021 = vlaneseq
    %v1022 = vshrl.u32 %v1021, 7
    %v1023 = vsub.s32 %v1020, %v1022
    %v1024 = vrot.slane %v1010, %v1023
    %v1025 = vcombine.low %v1017, %v1024
    %v1026 = vcombine.low %v381, %v385
    %v1027 = vcombine.low %v389, %v393
    %v1028 = vcombine.low %v397, %v401
    %v1029 = vcombine.low %v405, %v409
    %v1031 = vunpack.c.l.s4 1966171168
    %v1032 = vunpack.c.0.s8 %v1031
    %v1033 = vlaneseq
    %v1034 = vshrl.u32 %v1033, 7
    %v1035 = vsub.s32 %v1032, %v1034
    %v1036 = vrot.slane %v1026, %v1035
    %v1038 = vunpack.c.l.s4 1966171168
    %v1039 = vunpack.c.0.s8 %v1038
    %v1040 = vlaneseq
    %v1041 = vshrl.u32 %v1040, 7
    %v1042 = vsub.s32 %v1039, %v1041
    %v1043 = vrot.slane %v1027, %v1042
    %v1045 = vunpack.c.l.s4 1966171168
    %v1046 = vunpack.c.0.s8 %v1045
    %v1047 = vlaneseq
    %v1048 = vshrl.u32 %v1047, 7
    %v1049 = vsub.s32 %v1046, %v1048
    %v1050 = vrot.slane %v1028, %v1049
    %v1052 = vunpack.c.l.s4 1966171168
    %v1053 = vunpack.c.0.s8 %v1052
    %v1054 = vlaneseq
    %v1055 = vshrl.u32 %v1054, 7
    %v1056 = vsub.s32 %v1053, %v1055
    %v1057 = vrot.slane %v1029, %v1056
    %v1058 = vcombine.low %v1036, %v1043
    %v1059 = vcombine.low %v1050, %v1057
    %v1061 = vunpack.c.l.s4 1966171168
    %v1062 = vunpack.c.0.s8 %v1061
    %v1063 = vlaneseq
    %v1064 = vshrl.u32 %v1063, 7
    %v1065 = vsub.s32 %v1062, %v1064
    %v1066 = vrot.slane %v1058, %v1065
    %v1068 = vunpack.c.l.s4 1966171168
    %v1069 = vunpack.c.0.s8 %v1068
    %v1070 = vlaneseq
    %v1071 = vshrl.u32 %v1070, 7
    %v1072 = vsub.s32 %v1069, %v1071
    %v1073 = vrot.slane %v1059, %v1072
    %v1074 = vcombine.low %v1066, %v1073
    %v1075 = vcombine.low %v413, %v417
    %v1076 = vcombine.low %v421, %v425
    %v1077 = vcombine.low %v429, %v433
    %v1078 = vcombine.low %v437, %v441
    %v1080 = vunpack.c.l.s4 1966171168
    %v1081 = vunpack.c.0.s8 %v1080
    %v1082 = vlaneseq
    %v1083 = vshrl.u32 %v1082, 7
    %v1084 = vsub.s32 %v1081, %v1083
    %v1085 = vrot.slane %v1075, %v1084
    %v1087 = vunpack.c.l.s4 1966171168
    %v1088 = vunpack.c.0.s8 %v1087
    %v1089 = vlaneseq
    %v1090 = vshrl.u32 %v1089, 7
    %v1091 = vsub.s32 %v1088, %v1090
    %v1092 = vrot.slane %v1076, %v1091
    %v1094 = vunpack.c.l.s4 1966171168
    %v1095 = vunpack.c.0.s8 %v1094
    %v1096 = vlaneseq
    %v1097 = vshrl.u32 %v1096, 7
    %v1098 = vsub.s32 %v1095, %v1097
    %v1099 = vrot.slane %v1077, %v1098
    %v1101 = vunpack.c.l.s4 1966171168
    %v1102 = vunpack.c.0.s8 %v1101
    %v1103 = vlaneseq
    %v1104 = vshrl.u32 %v1103, 7
    %v1105 = vsub.s32 %v1102, %v1104
    %v1106 = vrot.slane %v1078, %v1105
    %v1107 = vcombine.low %v1085, %v1092
    %v1108 = vcombine.low %v1099, %v1106
    %v1110 = vunpack.c.l.s4 1966171168
    %v1111 = vunpack.c.0.s8 %v1110
    %v1112 = vlaneseq
    %v1113 = vshrl.u32 %v1112, 7
    %v1114 = vsub.s32 %v1111, %v1113
    %v1115 = vrot.slane %v1107, %v1114
    %v1117 = vunpack.c.l.s4 1966171168
    %v1118 = vunpack.c.0.s8 %v1117
    %v1119 = vlaneseq
    %v1120 = vshrl.u32 %v1119, 7
    %v1121 = vsub.s32 %v1118, %v1120
    %v1122 = vrot.slane %v1108, %v1121
    %v1123 = vcombine.low %v1115, %v1122
    %v1124 = vcombine.low %v445, %v449
    %v1125 = vcombine.low %v453, %v457
    %v1126 = vcombine.low %v461, %v465
    %v1127 = vcombine.low %v469, %v473
    %v1129 = vunpack.c.l.s4 1966171168
    %v1130 = vunpack.c.0.s8 %v1129
    %v1131 = vlaneseq
    %v1132 = vshrl.u32 %v1131, 7
    %v1133 = vsub.s32 %v1130, %v1132
    %v1134 = vrot.slane %v1124, %v1133
    %v1136 = vunpack.c.l.s4 1966171168
    %v1137 = vunpack.c.0.s8 %v1136
    %v1138 = vlaneseq
    %v1139 = vshrl.u32 %v1138, 7
    %v1140 = vsub.s32 %v1137, %v1139
    %v1141 = vrot.slane %v1125, %v1140
    %v1143 = vunpack.c.l.s4 1966171168
    %v1144 = vunpack.c.0.s8 %v1143
    %v1145 = vlaneseq
    %v1146 = vshrl.u32 %v1145, 7
    %v1147 = vsub.s32 %v1144, %v1146
    %v1148 = vrot.slane %v1126, %v1147
    %v1150 = vunpack.c.l.s4 1966171168
    %v1151 = vunpack.c.0.s8 %v1150
    %v1152 = vlaneseq
    %v1153 = vshrl.u32 %v1152, 7
    %v1154 = vsub.s32 %v1151, %v1153
    %v1155 = vrot.slane %v1127, %v1154
    %v1156 = vcombine.low %v1134, %v1141
    %v1157 = vcombine.low %v1148, %v1155
    %v1159 = vunpack.c.l.s4 1966171168
    %v1160 = vunpack.c.0.s8 %v1159
    %v1161 = vlaneseq
    %v1162 = vshrl.u32 %v1161, 7
    %v1163 = vsub.s32 %v1160, %v1162
    %v1164 = vrot.slane %v1156, %v1163
    %v1166 = vunpack.c.l.s4 1966171168
    %v1167 = vunpack.c.0.s8 %v1166
    %v1168 = vlaneseq
    %v1169 = vshrl.u32 %v1168, 7
    %v1170 = vsub.s32 %v1167, %v1169
    %v1171 = vrot.slane %v1157, %v1170
    %v1172 = vcombine.low %v1164, %v1171
    %v1173 = vcombine.low %v477, %v481
    %v1174 = vcombine.low %v485, %v489
    %v1175 = vcombine.low %v493, %v497
    %v1176 = vcombine.low %v501, %v505
    %v1178 = vunpack.c.l.s4 1966171168
    %v1179 = vunpack.c.0.s8 %v1178
    %v1180 = vlaneseq
    %v1181 = vshrl.u32 %v1180, 7
    %v1182 = vsub.s32 %v1179, %v1181
    %v1183 = vrot.slane %v1173, %v1182
    %v1185 = vunpack.c.l.s4 1966171168
    %v1186 = vunpack.c.0.s8 %v1185
    %v1187 = vlaneseq
    %v1188 = vshrl.u32 %v1187, 7
    %v1189 = vsub.s32 %v1186, %v1188
    %v1190 = vrot.slane %v1174, %v1189
    %v1192 = vunpack.c.l.s4 1966171168
    %v1193 = vunpack.c.0.s8 %v1192
    %v1194 = vlaneseq
    %v1195 = vshrl.u32 %v1194, 7
    %v1196 = vsub.s32 %v1193, %v1195
    %v1197 = vrot.slane %v1175, %v1196
    %v1199 = vunpack.c.l.s4 1966171168
    %v1200 = vunpack.c.0.s8 %v1199
    %v1201 = vlaneseq
    %v1202 = vshrl.u32 %v1201, 7
    %v1203 = vsub.s32 %v1200, %v1202
    %v1204 = vrot.slane %v1176, %v1203
    %v1205 = vcombine.low %v1183, %v1190
    %v1206 = vcombine.low %v1197, %v1204
    %v1208 = vunpack.c.l.s4 1966171168
    %v1209 = vunpack.c.0.s8 %v1208
    %v1210 = vlaneseq
    %v1211 = vshrl.u32 %v1210, 7
    %v1212 = vsub.s32 %v1209, %v1211
    %v1213 = vrot.slane %v1205, %v1212
    %v1215 = vunpack.c.l.s4 1966171168
    %v1216 = vunpack.c.0.s8 %v1215
    %v1217 = vlaneseq
    %v1218 = vshrl.u32 %v1217, 7
    %v1219 = vsub.s32 %v1216, %v1218
    %v1220 = vrot.slane %v1206, %v1219
    %v1221 = vcombine.low %v1213, %v1220
    %v1222 = vcombine.low %v509, %v513
    %v1223 = vcombine.low %v517, %v521
    %v1224 = vcombine.low %v525, %v529
    %v1225 = vcombine.low %v533, %v537
    %v1227 = vunpack.c.l.s4 1966171168
    %v1228 = vunpack.c.0.s8 %v1227
    %v1229 = vlaneseq
    %v1230 = vshrl.u32 %v1229, 7
    %v1231 = vsub.s32 %v1228, %v1230
    %v1232 = vrot.slane %v1222, %v1231
    %v1234 = vunpack.c.l.s4 1966171168
    %v1235 = vunpack.c.0.s8 %v1234
    %v1236 = vlaneseq
    %v1237 = vshrl.u32 %v1236, 7
    %v1238 = vsub.s32 %v1235, %v1237
    %v1239 = vrot.slane %v1223, %v1238
    %v1241 = vunpack.c.l.s4 1966171168
    %v1242 = vunpack.c.0.s8 %v1241
    %v1243 = vlaneseq
    %v1244 = vshrl.u32 %v1243, 7
    %v1245 = vsub.s32 %v1242, %v1244
    %v1246 = vrot.slane %v1224, %v1245
    %v1248 = vunpack.c.l.s4 1966171168
    %v1249 = vunpack.c.0.s8 %v1248
    %v1250 = vlaneseq
    %v1251 = vshrl.u32 %v1250, 7
    %v1252 = vsub.s32 %v1249, %v1251
    %v1253 = vrot.slane %v1225, %v1252
    %v1254 = vcombine.low %v1232, %v1239
    %v1255 = vcombine.low %v1246, %v1253
    %v1257 = vunpack.c.l.s4 1966171168
    %v1258 = vunpack.c.0.s8 %v1257
    %v1259 = vlaneseq
    %v1260 = vshrl.u32 %v1259, 7
    %v1261 = vsub.s32 %v1258, %v1260
    %v1262 = vrot.slane %v1254, %v1261
    %v1264 = vunpack.c.l.s4 1966171168
    %v1265 = vunpack.c.0.s8 %v1264
    %v1266 = vlaneseq
    %v1267 = vshrl.u32 %v1266, 7
    %v1268 = vsub.s32 %v1265, %v1267
    %v1269 = vrot.slane %v1255, %v1268
    %v1270 = vcombine.low %v1262, %v1269
    %v1271 = vcombine.low %v541, %v545
    %v1272 = vcombine.low %v549, %v553
    %v1273 = vcombine.low %v557, %v561
    %v1274 = vcombine.low %v565, %v569
    %v1276 = vunpack.c.l.s4 1966171168
    %v1277 = vunpack.c.0.s8 %v1276
    %v1278 = vlaneseq
    %v1279 = vshrl.u32 %v1278, 7
    %v1280 = vsub.s32 %v1277, %v1279
    %v1281 = vrot.slane %v1271, %v1280
    %v1283 = vunpack.c.l.s4 1966171168
    %v1284 = vunpack.c.0.s8 %v1283
    %v1285 = vlaneseq
    %v1286 = vshrl.u32 %v1285, 7
    %v1287 = vsub.s32 %v1284, %v1286
    %v1288 = vrot.slane %v1272, %v1287
    %v1290 = vunpack.c.l.s4 1966171168
    %v1291 = vunpack.c.0.s8 %v1290
    %v1292 = vlaneseq
    %v1293 = vshrl.u32 %v1292, 7
    %v1294 = vsub.s32 %v1291, %v1293
    %v1295 = vrot.slane %v1273, %v1294
    %v1297 = vunpack.c.l.s4 1966171168
    %v1298 = vunpack.c.0.s8 %v1297
    %v1299 = vlaneseq
    %v1300 = vshrl.u32 %v1299, 7
    %v1301 = vsub.s32 %v1298, %v1300
    %v1302 = vrot.slane %v1274, %v1301
    %v1303 = vcombine.low %v1281, %v1288
    %v1304 = vcombine.low %v1295, %v1302
    %v1306 = vunpack.c.l.s4 1966171168
    %v1307 = vunpack.c.0.s8 %v1306
    %v1308 = vlaneseq
    %v1309 = vshrl.u32 %v1308, 7
    %v1310 = vsub.s32 %v1307, %v1309
    %v1311 = vrot.slane %v1303, %v1310
    %v1313 = vunpack.c.l.s4 1966171168
    %v1314 = vunpack.c.0.s8 %v1313
    %v1315 = vlaneseq
    %v1316 = vshrl.u32 %v1315, 7
    %v1317 = vsub.s32 %v1314, %v1316
    %v1318 = vrot.slane %v1304, %v1317
    %v1319 = vcombine.low %v1311, %v1318
    %v1320 = vcombine.low %v573, %v577
    %v1321 = vcombine.low %v581, %v585
    %v1322 = vcombine.low %v589, %v593
    %v1323 = vcombine.low %v597, %v601
    %v1325 = vunpack.c.l.s4 1966171168
    %v1326 = vunpack.c.0.s8 %v1325
    %v1327 = vlaneseq
    %v1328 = vshrl.u32 %v1327, 7
    %v1329 = vsub.s32 %v1326, %v1328
    %v1330 = vrot.slane %v1320, %v1329
    %v1332 = vunpack.c.l.s4 1966171168
    %v1333 = vunpack.c.0.s8 %v1332
    %v1334 = vlaneseq
    %v1335 = vshrl.u32 %v1334, 7
    %v1336 = vsub.s32 %v1333, %v1335
    %v1337 = vrot.slane %v1321, %v1336
    %v1339 = vunpack.c.l.s4 1966171168
    %v1340 = vunpack.c.0.s8 %v1339
    %v1341 = vlaneseq
    %v1342 = vshrl.u32 %v1341, 7
    %v1343 = vsub.s32 %v1340, %v1342
    %v1344 = vrot.slane %v1322, %v1343
    %v1346 = vunpack.c.l.s4 1966171168
    %v1347 = vunpack.c.0.s8 %v1346
    %v1348 = vlaneseq
    %v1349 = vshrl.u32 %v1348, 7
    %v1350 = vsub.s32 %v1347, %v1349
    %v1351 = vrot.slane %v1323, %v1350
    %v1352 = vcombine.low %v1330, %v1337
    %v1353 = vcombine.low %v1344, %v1351
    %v1355 = vunpack.c.l.s4 1966171168
    %v1356 = vunpack.c.0.s8 %v1355
    %v1357 = vlaneseq
    %v1358 = vshrl.u32 %v1357, 7
    %v1359 = vsub.s32 %v1356, %v1358
    %v1360 = vrot.slane %v1352, %v1359
    %v1362 = vunpack.c.l.s4 1966171168
    %v1363 = vunpack.c.0.s8 %v1362
    %v1364 = vlaneseq
    %v1365 = vshrl.u32 %v1364, 7
    %v1366 = vsub.s32 %v1363, %v1365
    %v1367 = vrot.slane %v1353, %v1366
    %v1368 = vcombine.low %v1360, %v1367
    %v1369 = vcombine.low %v605, %v609
    %v1370 = vcombine.low %v613, %v617
    %v1371 = vcombine.low %v621, %v625
    %v1372 = vcombine.low %v629, %v633
    %v1374 = vunpack.c.l.s4 1966171168
    %v1375 = vunpack.c.0.s8 %v1374
    %v1376 = vlaneseq
    %v1377 = vshrl.u32 %v1376, 7
    %v1378 = vsub.s32 %v1375, %v1377
    %v1379 = vrot.slane %v1369, %v1378
    %v1381 = vunpack.c.l.s4 1966171168
    %v1382 = vunpack.c.0.s8 %v1381
    %v1383 = vlaneseq
    %v1384 = vshrl.u32 %v1383, 7
    %v1385 = vsub.s32 %v1382, %v1384
    %v1386 = vrot.slane %v1370, %v1385
    %v1388 = vunpack.c.l.s4 1966171168
    %v1389 = vunpack.c.0.s8 %v1388
    %v1390 = vlaneseq
    %v1391 = vshrl.u32 %v1390, 7
    %v1392 = vsub.s32 %v1389, %v1391
    %v1393 = vrot.slane %v1371, %v1392
    %v1395 = vunpack.c.l.s4 1966171168
    %v1396 = vunpack.c.0.s8 %v1395
    %v1397 = vlaneseq
    %v1398 = vshrl.u32 %v1397, 7
    %v1399 = vsub.s32 %v1396, %v1398
    %v1400 = vrot.slane %v1372, %v1399
    %v1401 = vcombine.low %v1379, %v1386
    %v1402 = vcombine.low %v1393, %v1400
    %v1404 = vunpack.c.l.s4 1966171168
    %v1405 = vunpack.c.0.s8 %v1404
    %v1406 = vlaneseq
    %v1407 = vshrl.u32 %v1406, 7
    %v1408 = vsub.s32 %v1405, %v1407
    %v1409 = vrot.slane %v1401, %v1408
    %v1411 = vunpack.c.l.s4 1966171168
    %v1412 = vunpack.c.0.s8 %v1411
    %v1413 = vlaneseq
    %v1414 = vshrl.u32 %v1413, 7
    %v1415 = vsub.s32 %v1412, %v1414
    %v1416 = vrot.slane %v1402, %v1415
    %v1417 = vcombine.low %v1409, %v1416
    %1418 = vset.pattern.permute.xlu0 0
    %1419 = vperm.xlu0 %1418, %v682
    %v1420 = vpop.permute.xlu0 %1419
    %1421 = vset.pattern.permute.xlu0 0
    %1422 = vperm.xlu0 %1421, %v731
    %v1423 = vpop.permute.xlu0 %1422
    %1424 = vset.pattern.permute.xlu0 0
    %1425 = vperm.xlu0 %1424, %v780
    %v1426 = vpop.permute.xlu0 %1425
    %1427 = vset.pattern.permute.xlu0 0
    %1428 = vperm.xlu0 %1427, %v829
    %v1429 = vpop.permute.xlu0 %1428
    %1430 = vset.pattern.permute.xlu0 0
    %1431 = vperm.xlu0 %1430, %v878
    %v1432 = vpop.permute.xlu0 %1431
    %1433 = vset.pattern.permute.xlu0 0
    %1434 = vperm.xlu0 %1433, %v927
    %v1435 = vpop.permute.xlu0 %1434
    %1436 = vset.pattern.permute.xlu0 0
    %1437 = vperm.xlu0 %1436, %v976
    %v1438 = vpop.permute.xlu0 %1437
    %1439 = vset.pattern.permute.xlu0 0
    %1440 = vperm.xlu0 %1439, %v1025
    %v1441 = vpop.permute.xlu0 %1440
    %1442 = vset.pattern.permute.xlu0 0
    %1443 = vperm.xlu0 %1442, %v1074
    %v1444 = vpop.permute.xlu0 %1443
    %1445 = vset.pattern.permute.xlu0 0
    %1446 = vperm.xlu0 %1445, %v1123
    %v1447 = vpop.permute.xlu0 %1446
    %1448 = vset.pattern.permute.xlu0 0
    %1449 = vperm.xlu0 %1448, %v1172
    %v1450 = vpop.permute.xlu0 %1449
    %1451 = vset.pattern.permute.xlu0 0
    %1452 = vperm.xlu0 %1451, %v1221
    %v1453 = vpop.permute.xlu0 %1452
    %1454 = vset.pattern.permute.xlu0 0
    %1455 = vperm.xlu0 %1454, %v1270
    %v1456 = vpop.permute.xlu0 %1455
    %1457 = vset.pattern.permute.xlu0 0
    %1458 = vperm.xlu0 %1457, %v1319
    %v1459 = vpop.permute.xlu0 %1458
    %1460 = vset.pattern.permute.xlu0 0
    %1461 = vperm.xlu0 %1460, %v1368
    %v1462 = vpop.permute.xlu0 %1461
    %1463 = vset.pattern.permute.xlu0 0
    %1464 = vperm.xlu0 %1463, %v1417
    %v1465 = vpop.permute.xlu0 %1464
    %v1466 = vlaneseq
    %v1467 = vand.u32 %v1466, 127
    %v1468 = vlaneseq
    %v1469 = vshrl.u32 %v1468, 7
    %v1470 = vsub.s32 %v1467, %v1469
    %v1471 = vrot.slane %v1420, %v1470
    %v1472 = vadd.s32 %v1467, 4294967288
    %v1473 = vlaneseq
    %v1474 = vshrl.u32 %v1473, 7
    %v1475 = vsub.s32 %v1472, %v1474
    %v1476 = vrot.slane %v1423, %v1475
    %vm1477 = vcmask 130112
    %v1478 = vsel %vm1477, %v1476, %v1471
    %v1479 = vadd.s32 %v1467, 4294967280
    %v1480 = vlaneseq
    %v1481 = vshrl.u32 %v1480, 7
    %v1482 = vsub.s32 %v1479, %v1481
    %v1483 = vrot.slane %v1426, %v1482
    %vm1484 = vcmask 195712
    %v1485 = vsel %vm1484, %v1483, %v1478
    %v1486 = vadd.s32 %v1467, 4294967272
    %v1487 = vlaneseq
    %v1488 = vshrl.u32 %v1487, 7
    %v1489 = vsub.s32 %v1486, %v1488
    %v1490 = vrot.slane %v1429, %v1489
    %vm1491 = vcmask 261312
    %v1492 = vsel %vm1491, %v1490, %v1485
    %v1493 = vadd.s32 %v1467, 4294967264
    %v1494 = vlaneseq
    %v1495 = vshrl.u32 %v1494, 7
    %v1496 = vsub.s32 %v1493, %v1495
    %v1497 = vrot.slane %v1432, %v1496
    %vm1498 = vcmask 326912
    %v1499 = vsel %vm1498, %v1497, %v1492
    %v1500 = vadd.s32 %v1467, 4294967256
    %v1501 = vlaneseq
    %v1502 = vshrl.u32 %v1501, 7
    %v1503 = vsub.s32 %v1500, %v1502
    %v1504 = vrot.slane %v1435, %v1503
    %vm1505 = vcmask 392512
    %v1506 = vsel %vm1505, %v1504, %v1499
    %v1507 = vadd.s32 %v1467, 4294967248
    %v1508 = vlaneseq
    %v1509 = vshrl.u32 %v1508, 7
    %v1510 = vsub.s32 %v1507, %v1509
    %v1511 = vrot.slane %v1438, %v1510
    %vm1512 = vcmask 458112
    %v1513 = vsel %vm1512, %v1511, %v1506
    %v1514 = vadd.s32 %v1467, 4294967240
    %v1515 = vlaneseq
    %v1516 = vshrl.u32 %v1515, 7
    %v1517 = vsub.s32 %v1514, %v1516
    %v1518 = vrot.slane %v1441, %v1517
    %vm1519 = vcmask 523712
    %v1520 = vsel %vm1519, %v1518, %v1513
    %v1521 = vadd.s32 %v1467, 4294967232
    %v1522 = vlaneseq
    %v1523 = vshrl.u32 %v1522, 7
    %v1524 = vsub.s32 %v1521, %v1523
    %v1525 = vrot.slane %v1444, %v1524
    %vm1526 = vcmask 589312
    %v1527 = vsel %vm1526, %v1525, %v1520
    %v1528 = vadd.s32 %v1467, 4294967224
    %v1529 = vlaneseq
    %v1530 = vshrl.u32 %v1529, 7
    %v1531 = vsub.s32 %v1528, %v1530
    %v1532 = vrot.slane %v1447, %v1531
    %vm1533 = vcmask 654912
    %v1534 = vsel %vm1533, %v1532, %v1527
    %v1535 = vadd.s32 %v1467, 4294967216
    %v1536 = vlaneseq
    %v1537 = vshrl.u32 %v1536, 7
    %v1538 = vsub.s32 %v1535, %v1537
    %v1539 = vrot.slane %v1450, %v1538
    %vm1540 = vcmask 720512
    %v1541 = vsel %vm1540, %v1539, %v1534
    %v1542 = vadd.s32 %v1467, 4294967208
    %v1543 = vlaneseq
    %v1544 = vshrl.u32 %v1543, 7
    %v1545 = vsub.s32 %v1542, %v1544
    %v1546 = vrot.slane %v1453, %v1545
    %vm1547 = vcmask 786112
    %v1548 = vsel %vm1547, %v1546, %v1541
    %v1549 = vadd.s32 %v1467, 4294967200
    %v1550 = vlaneseq
    %v1551 = vshrl.u32 %v1550, 7
    %v1552 = vsub.s32 %v1549, %v1551
    %v1553 = vrot.slane %v1456, %v1552
    %vm1554 = vcmask 851712
    %v1555 = vsel %vm1554, %v1553, %v1548
    %v1556 = vadd.s32 %v1467, 4294967192
    %v1557 = vlaneseq
    %v1558 = vshrl.u32 %v1557, 7
    %v1559 = vsub.s32 %v1556, %v1558
    %v1560 = vrot.slane %v1459, %v1559
    %vm1561 = vcmask 917312
    %v1562 = vsel %vm1561, %v1560, %v1555
    %v1563 = vadd.s32 %v1467, 4294967184
    %v1564 = vlaneseq
    %v1565 = vshrl.u32 %v1564, 7
    %v1566 = vsub.s32 %v1563, %v1565
    %v1567 = vrot.slane %v1462, %v1566
    %vm1568 = vcmask 982912
    %v1569 = vsel %vm1568, %v1567, %v1562
    %v1570 = vadd.s32 %v1467, 4294967176
    %v1571 = vlaneseq
    %v1572 = vshrl.u32 %v1571, 7
    %v1573 = vsub.s32 %v1570, %v1572
    %v1574 = vrot.slane %v1465, %v1573
    %vm1575 = vcmask 1048512
    %v1576 = vsel %vm1575, %v1574, %v1569
    %v1578 = vunpack.c.l.s4 1966171168
    %v1579 = vunpack.c.0.s8 %v1578
    %v1580 = vlaneseq
    %v1581 = vshrl.u32 %v1580, 7
    %v1582 = vsub.s32 %v1579, %v1581
    %v1583 = vrot.slane %v1576, %v1582
    %v1585 = vunpack.c.l.s4 1966171168
    %v1586 = vunpack.c.0.s8 %v1585
    %v1587 = vlaneseq
    %v1588 = vshrl.u32 %v1587, 7
    %v1589 = vsub.s32 %v1586, %v1588
    %v1590 = vrot.slane %v1583, %v1589
    %v1592 = vadd.f32 %v34, %v1590
    %1593 = vst [vmem:[#allocation2] sm:$0x1] %v1592
    // Predicated region
    $region14: #{tpu_custom_call.1} parent=1 // pred_check
      %p1594 = pneg %p12
    $region15: #{tpu_custom_call.1} parent=1 // pred_check_branch
      %1596 = sbr.rel (%p1594) target = $region17
    $region16: #{tpu_custom_call.1} parent=1 // pred_region
      %v1597 = vld [vmem:[#allocation2] sm:$0x1]
      %1598 = vst [vmem:[#allocation3] sm:$0x1] %v1597
    $region17: #{tpu_custom_call.1} parent=1 // pred_fallthru
      _
    // Predicated region
    $region18: #{tpu_custom_call.1} parent=1 // pred_check
      _
    $region19: #{tpu_custom_call.1} parent=1 // pred_check_branch
      %1600 = sbr.rel (0) target = $region21
    $region20: #{tpu_custom_call.1} parent=1 // pred_region
      %s1602 = ssub.s32 16, 16
      %1603 = vsyncadd [#allocation4], %s1602
      %s1605 = sshll.u32 [#allocation3], 4
      %s1606 = int_to_ptr.vmem [resolvable:$true] %s1605
      %1608 = dma.vmem_to_hbm [thread:$0]  %s1606, 16, %s2, [#allocation4]
    $region21: #{tpu_custom_call.1} parent=1 // pred_fallthru
      _
    // Predicated region
    $region22: #{tpu_custom_call.1} parent=1 // pred_check
      _
    $region23: #{tpu_custom_call.1} parent=1 // pred_check_branch
      %1610 = sbr.rel (0) target = $region25
    $region24: #{tpu_custom_call.1} parent=1 // pred_region
      %1611 = dma.done [#allocation4], 16
    $region25: #{tpu_custom_call.1} parent=1 // pred_fallthru
      _
    %1612 = vsyncpa [#allocation4], 1

</llo_original>
